<compile_context>
chip_gen: v5e
topology: v5e:2x2
jax: 0.10.0
libtpu: 0.0.40
codegen_flags: <defaults>
</compile_context>

<pallas_src>
import functools

import jax
import jax.numpy as jnp
from jax.experimental import pallas as pl
from jax.experimental.pallas import tpu as pltpu


def _round_up(v: int, m: int) -> int:
    return ((v + m - 1) // m) * m


def _physical_vmem_bytes() -> int:
    """Per-TensorCore physical VMEM; conservative fallback if the query fails."""
    try:
        info = pltpu.get_tpu_info()
        v = int(getattr(info, "vmem_capacity_bytes", 0))
        if v > 0:
            return v
    except Exception:
        pass
    return 64 * 1024 * 1024  # v7x-sized fallback (smallest of the three gens)


def _pick_tile(total: int, target: int, unit: int) -> int:
    """Largest divisor of `total` that is a multiple of `unit` and <= target."""
    assert total % unit == 0
    m = total // unit
    target_d = max(target // unit, 1)
    best = 1
    for d in range(1, m + 1):
        if m % d == 0 and d <= target_d:
            best = d
    return best * unit


def _select_tiles(M_pad: int, K_pad: int, N_pad: int, out_itemsize: int,
                  vmem_budget: int):
    """M-dependent tile policy (decode = streaming, prefill = MXU-shaped)."""
    decode = M_pad <= 128
    if decode:
        # Weight-bandwidth-bound: one M block, K as deep as possible, wide N so
        # the weight block per grid step is multiple MiB.
        tm = M_pad
        tk_target = K_pad
        tn_target = 1024
        # v7x megacore: keep >= 2 blocks on the parallel N axis when possible so
        # both TensorCores get work (near-zero cost on single-TC v5e/v6e).
        if N_pad >= 256:
            tn_target = min(tn_target, N_pad // 2)
    else:
        # Compute-bound prefill: balanced M blocks near 256, MXU-shaped N/K.
        nblk = -(-M_pad // 256)
        tm = _round_up(-(-M_pad // nblk), 8)
        tk_target = 1024
        tn_target = 512

    tk = _pick_tile(K_pad, tk_target, 128)
    tn = _pick_tile(N_pad, tn_target, 128)

    def vmem_bytes(tm_, tn_, tk_):
        return (2 * tm_ * tk_ * 2          # x  (bf16, double-buffered)
                + 2 * tk_ * tn_ * 2        # W  (bf16, double-buffered)
                + 2 * 8 * tn_ * 4          # bias (f32, sublane-padded, dbl-buf)
                + tm_ * tn_ * 4            # f32 accumulator scratch
                + 2 * tm_ * tn_ * out_itemsize)  # output (double-buffered)

    # Shrink K depth first, then N width, until the working set fits.
    while vmem_bytes(tm, tn, tk) > vmem_budget and tk > 128:
        tk = _pick_tile(K_pad, tk // 2, 128)
    while vmem_bytes(tm, tn, tk) > vmem_budget and tn > 128:
        tn = _pick_tile(N_pad, tn // 2, 128)
    return tm, tn, tk


def _qkv_matmul_kernel(x_ref, w_ref, b_ref, o_ref, acc_ref):
    """One (tm, tn) output tile, accumulated over the K grid axis."""
    k = pl.program_id(2)

    # bf16 x bf16 -> f32 on the MXU.
    partial = jnp.dot(x_ref[...], w_ref[...], preferred_element_type=jnp.float32)

    @pl.when(k == 0)
    def _():
        acc_ref[...] = partial          # direct write: no zero-fill pass

    @pl.when(k > 0)
    def _():
        acc_ref[...] += partial

    @pl.when(k == pl.num_programs(2) - 1)
    def _():
        # Bias add + cast exactly once, at finalize.
        o_ref[...] = (acc_ref[...] + b_ref[...]).astype(o_ref.dtype)


@functools.partial(jax.jit, static_argnames=("n_valid",))
def merged_qkv_projection(x_2d: jax.Array,
                          w_padded: jax.Array,
                          b_padded: jax.Array,
                          *,
                          n_valid: int) -> jax.Array:
    """x_2d: [M, H]; w_padded: [K_pad, N_pad] bf16 (pre-padded, pre-cast);
    b_padded: [1, N_pad] f32.  Returns (x @ W + b)[:, :n_valid] in x_2d.dtype,
    computed with bf16 operands and f32 accumulation."""
    M, K = x_2d.shape
    K_pad, N_pad = w_padded.shape
    assert K <= K_pad and K_pad % 128 == 0 and N_pad % 128 == 0
    out_dtype = x_2d.dtype
    out_itemsize = jnp.dtype(out_dtype).itemsize

    # ~75% of physical VMEM: ~96 MiB on v5e/v6e, ~48 MiB on v7x.
    vmem_limit = (3 * _physical_vmem_bytes()) // 4

    M_pad = _round_up(M, 8)
    tm, tn, tk = _select_tiles(M_pad, K_pad, N_pad, out_itemsize,
                               int(vmem_limit * 0.9))
    M_full = _round_up(M_pad, tm)

    # Only the (small) activation is padded / cast per call; zero padding is
    # exact for the matmul.
    x_c = jnp.pad(x_2d.astype(jnp.bfloat16), ((0, M_full - M), (0, K_pad - K)))

    grid = (N_pad // tn, M_full // tm, K_pad // tk)   # (j, i, k); K innermost.

    cost = pl.CostEstimate(
        flops=2 * M_full * K_pad * N_pad,
        transcendentals=0,
        bytes_accessed=(x_c.size * 2 + w_padded.size * 2 + b_padded.size * 4
                        + M_full * N_pad * out_itemsize),
    )

    out_padded = pl.pallas_call(
        _qkv_matmul_kernel,
        out_shape=jax.ShapeDtypeStruct((M_full, N_pad), out_dtype),
        grid_spec=pltpu.PrefetchScalarGridSpec(
            num_scalar_prefetch=0,
            grid=grid,
            in_specs=[
                pl.BlockSpec((tm, tk), lambda j, i, k: (i, k)),   # activations
                # TODO(synk): optionally pipeline_mode=pl.Buffered(3) here if the
                # weight DMA is still exposed after the block-size fix (v7x).
                pl.BlockSpec((tk, tn), lambda j, i, k: (k, j)),   # merged QKV weight
                pl.BlockSpec((1, tn), lambda j, i, k: (0, j)),    # bias (finalize only)
            ],
            out_specs=pl.BlockSpec((tm, tn), lambda j, i, k: (i, j)),
            scratch_shapes=[pltpu.VMEM((tm, tn), jnp.float32)],
        ),
        compiler_params=pltpu.CompilerParams(
            dimension_semantics=("parallel", "parallel", "arbitrary"),
            vmem_limit_bytes=int(vmem_limit),
        ),
        cost_estimate=cost,
    )(x_c, w_padded, b_padded)

    if M_full == M and N_pad == n_valid:
        return out_padded
    return out_padded[:M, :n_valid]


class ParentModule:
    """Stand-in for the transformer attention module holding the merged
    GQAQKVColumnParallelLinear ('gqa_qkv_proj')."""

    def __init__(self, hidden_size: int, q_dim: int, kv_dim: int, key: jax.Array):
        kq, kk, kv, kb = jax.random.split(key, 4)
        # PyTorch Linear weights are [out, in]; store transposed [in, out] and
        # concatenate along the output axis: q | k | v.
        wq = jax.random.normal(kq, (hidden_size, q_dim), jnp.float32) * 0.02
        wk = jax.random.normal(kk, (hidden_size, kv_dim), jnp.float32) * 0.02
        wv = jax.random.normal(kv, (hidden_size, kv_dim), jnp.float32) * 0.02
        b = jax.random.normal(kb, (1, q_dim + 2 * kv_dim), jnp.float32) * 0.02

        self.hidden_size = hidden_size
        self.q_dim = q_dim
        self.kv_dim = kv_dim
        self.n_out = q_dim + 2 * kv_dim

        K_pad = _round_up(hidden_size, 128)
        N_pad = _round_up(self.n_out, 128)
        w = jnp.concatenate([wq, wk, wv], axis=1)
        # Pre-pad + pre-cast ONCE at init: no per-call HBM pass over the weight.
        self.w_padded = jnp.pad(
            w, ((0, K_pad - hidden_size), (0, N_pad - self.n_out))
        ).astype(jnp.bfloat16)
        self.b_padded = jnp.pad(
            b, ((0, 0), (0, N_pad - self.n_out))
        ).astype(jnp.float32)
        # f32 unpadded copies kept only for the numeric reference check.
        self._w_f32 = w
        self._b_f32 = b

    # GQAQKVColumnParallelLinear.__call__ equivalent.
    def gqa_qkv_proj(self, hidden_states: jax.Array):
        B, S, H = hidden_states.shape
        x2d = hidden_states.reshape(B * S, H)
        out = merged_qkv_projection(x2d, self.w_padded, self.b_padded,
                                    n_valid=self.n_out)        # [B*S, Ntot]
        q = out[:, : self.q_dim].reshape(B, S, self.q_dim)
        k = out[:, self.q_dim: self.q_dim + self.kv_dim].reshape(B, S, self.kv_dim)
        v = out[:, self.q_dim + self.kv_dim:].reshape(B, S, self.kv_dim)
        return (q, k, v)


class FakeProj:
    """JAX port of optimum.neuron.distributed.utils.FakeProj."""

    def __init__(self, fully_qualified_name, proj_name, output_index,
                 get_parent_module, parent_module_fully_qualified_name,
                 gqa_qkv_proj_name):
        self.fully_qualified_name = fully_qualified_name
        self.proj_name = proj_name
        self.output_index = output_index
        self.get_parent_module = get_parent_module
        self.parent_module_fully_qualified_name = parent_module_fully_qualified_name
        self.gqa_qkv_proj_name = gqa_qkv_proj_name

    def __call__(self, hidden_states: jax.Array) -> jax.Array:
        parent_module = self.get_parent_module()
        gqa_qkv_column_parallel_linear = getattr(parent_module, self.gqa_qkv_proj_name)
        if not hasattr(parent_module, "_gqa_qkv_output"):
            parent_module._gqa_qkv_output = gqa_qkv_column_parallel_linear(hidden_states)
            parent_module._gqa_qkv_output_fetch_counter = 0
        parent_module._gqa_qkv_output_fetch_counter += 1
        output = parent_module._gqa_qkv_output[self.output_index]
        if parent_module._gqa_qkv_output_fetch_counter == 3:
            del parent_module._gqa_qkv_output
        return output


if __name__ == "__main__":
    key = jax.random.PRNGKey(0)
    k_parent, k_x = jax.random.split(key)

    B, S, H = 2, 8, 32          # batch, seq, hidden
    q_dim, kv_dim = 32, 16      # GQA: 4 q-heads x 8, 2 kv-heads x 8

    parent = ParentModule(H, q_dim, kv_dim, k_parent)
    get_parent = lambda: parent

    q_proj = FakeProj("model.layers.0.self_attn.q_proj", "q_proj", 0, get_parent,
                      "model.layers.0.self_attn", "gqa_qkv_proj")
    k_proj = FakeProj("model.layers.0.self_attn.k_proj", "k_proj", 1, get_parent,
                      "model.layers.0.self_attn", "gqa_qkv_proj")
    v_proj = FakeProj("model.layers.0.self_attn.v_proj", "v_proj", 2, get_parent,
                      "model.layers.0.self_attn", "gqa_qkv_proj")

    hidden_states = jax.random.normal(k_x, (B, S, H), jnp.float32)

    q = q_proj(hidden_states)
    k = k_proj(hidden_states)
    v = v_proj(hidden_states)
    jax.block_until_ready((q, k, v))

    # Cache must be consumed after 3 fetches (mirrors the PyTorch module).
    assert not hasattr(parent, "_gqa_qkv_output")

    # Numeric reference: same bf16 precision contract as the kernel
    # (bf16 operands, f32 accumulation), so this matches tightly.
    x2d = hidden_states.reshape(B * S, H).astype(jnp.bfloat16).astype(jnp.float32)
    wf = parent._w_f32.astype(jnp.bfloat16).astype(jnp.float32)
    ref = x2d @ wf + parent._b_f32
    q_ref = ref[:, :q_dim].reshape(B, S, q_dim)
    k_ref = ref[:, q_dim:q_dim + kv_dim].reshape(B, S, kv_dim)
    v_ref = ref[:, q_dim + kv_dim:].reshape(B, S, kv_dim)

    assert q.shape == (B, S, q_dim) and k.shape == (B, S, kv_dim) and v.shape == (B, S, kv_dim)
    assert jnp.allclose(q, q_ref, atol=1e-3, rtol=1e-3)
    assert jnp.allclose(k, k_ref, atol=1e-3, rtol=1e-3)
    assert jnp.allclose(v, v_ref, atol=1e-3, rtol=1e-3)

    print("KERNEL_OK")
</pallas_src>

<mosaic_0001>
module attributes {stable_mosaic.version = 11 : i64} {
  func.func @_qkv_matmul_kernel(%arg0: i32, %arg1: i32, %arg2: i32, %arg3: memref<16x128xbf16, #tpu.memory_space<vmem>>, %arg4: memref<128x128xbf16, #tpu.memory_space<vmem>>, %arg5: memref<1x128xf32, #tpu.memory_space<vmem>>, %arg6: memref<16x128xf32, #tpu.memory_space<vmem>>, %arg7: memref<16x128xf32, #tpu.memory_space<vmem>>) attributes {dimension_semantics = [#tpu.dimension_semantics<parallel>, #tpu.dimension_semantics<parallel>, #tpu.dimension_semantics<arbitrary>], iteration_bounds = array<i64: 1, 1, 1>, scalar_prefetch = 0 : i64, scratch_operands = 1 : i64, tpu.core_type = #tpu.core_type<tc>, window_params = [{transform_indices = @transform_0, window_bounds = array<i64: 16, 128>}, {transform_indices = @transform_1, window_bounds = array<i64: 128, 128>}, {transform_indices = @transform_2, window_bounds = array<i64: 1, 128>}, {transform_indices = @transform_3, window_bounds = array<i64: 16, 128>}]} {
    %c0 = arith.constant 0 : index
    %c0_0 = arith.constant 0 : index
    %0 = vector.load %arg3[%c0, %c0_0] : memref<16x128xbf16, #tpu.memory_space<vmem>>, vector<16x128xbf16>
    %c0_1 = arith.constant 0 : index
    %c0_2 = arith.constant 0 : index
    %1 = vector.load %arg4[%c0_1, %c0_2] : memref<128x128xbf16, #tpu.memory_space<vmem>>, vector<128x128xbf16>
    %cst = arith.constant dense<0.000000e+00> : vector<16x128xf32>
    %2 = tpu.matmul %0, %1, %cst {dimension_numbers = #tpu.dot_dimension_numbers<[1], [0], [0], [1], [0, 0, 1, 1], [], []>} : vector<16x128xbf16>, vector<128x128xbf16>, vector<16x128xf32> -> vector<16x128xf32>
    %c0_i32 = arith.constant 0 : i32
    %3 = arith.cmpi eq, %arg2, %c0_i32 : i32
    %4 = arith.extui %3 : i1 to i32
    %c0_i32_3 = arith.constant 0 : i32
    %5 = arith.cmpi ne, %4, %c0_i32_3 : i32
    scf.if %5 {
      %c0_8 = arith.constant 0 : index
      %c0_9 = arith.constant 0 : index
      %12 = vector.load %arg7[%c0_8, %c0_9] : memref<16x128xf32, #tpu.memory_space<vmem>>, vector<16x128xf32>
      tpu.vector_store %arg7[%c0_8, %c0_9], %2 {strides = array<i32>} : memref<16x128xf32, #tpu.memory_space<vmem>>, vector<16x128xf32>,
    } else {
    }
    %c0_i32_4 = arith.constant 0 : i32
    %6 = arith.cmpi sgt, %arg2, %c0_i32_4 : i32
    %7 = arith.extui %6 : i1 to i32
    %c0_i32_5 = arith.constant 0 : i32
    %8 = arith.cmpi ne, %7, %c0_i32_5 : i32
    scf.if %8 {
      %c0_8 = arith.constant 0 : index
      %c0_9 = arith.constant 0 : index
      %12 = vector.load %arg7[%c0_8, %c0_9] : memref<16x128xf32, #tpu.memory_space<vmem>>, vector<16x128xf32>
      %13 = arith.addf %12, %2 : vector<16x128xf32>
      %c0_10 = arith.constant 0 : index
      %c0_11 = arith.constant 0 : index
      %14 = vector.load %arg7[%c0_10, %c0_11] : memref<16x128xf32, #tpu.memory_space<vmem>>, vector<16x128xf32>
      tpu.vector_store %arg7[%c0_10, %c0_11], %13 {strides = array<i32>} : memref<16x128xf32, #tpu.memory_space<vmem>>, vector<16x128xf32>,
    } else {
    }
    %c0_i32_6 = arith.constant 0 : i32
    %9 = arith.cmpi eq, %arg2, %c0_i32_6 : i32
    %10 = arith.extui %9 : i1 to i32
    %c0_i32_7 = arith.constant 0 : i32
    %11 = arith.cmpi ne, %10, %c0_i32_7 : i32
    scf.if %11 {
      %c0_8 = arith.constant 0 : index
      %c0_9 = arith.constant 0 : index
      %12 = vector.load %arg7[%c0_8, %c0_9] : memref<16x128xf32, #tpu.memory_space<vmem>>, vector<16x128xf32>
      %c0_10 = arith.constant 0 : index
      %c0_11 = arith.constant 0 : index
      %13 = vector.load %arg5[%c0_10, %c0_11] : memref<1x128xf32, #tpu.memory_space<vmem>>, vector<1x128xf32>
      %14 = vector.broadcast %13 : vector<1x128xf32> to vector<16x128xf32>
      %15 = arith.addf %12, %14 : vector<16x128xf32>
      %c0_12 = arith.constant 0 : index
      %c0_13 = arith.constant 0 : index
      %16 = vector.load %arg6[%c0_12, %c0_13] : memref<16x128xf32, #tpu.memory_space<vmem>>, vector<16x128xf32>
      tpu.vector_store %arg6[%c0_12, %c0_13], %15 {strides = array<i32>} : memref<16x128xf32, #tpu.memory_space<vmem>>, vector<16x128xf32>,
    } else {
    }
    return
  }
  func.func @transform_0(%arg0: i32, %arg1: i32, %arg2: i32) -> (i32, i32) {
    %c0_i32 = arith.constant 0 : i32
    return %arg1, %arg2 : i32, i32
  }
  func.func @transform_1(%arg0: i32, %arg1: i32, %arg2: i32) -> (i32, i32) {
    %c0_i32 = arith.constant 0 : i32
    return %arg2, %arg0 : i32, i32
  }
  func.func @transform_2(%arg0: i32, %arg1: i32, %arg2: i32) -> (i32, i32) {
    %c0_i32 = arith.constant 0 : i32
    %c0_i32_0 = arith.constant 0 : i32
    return %c0_i32, %arg0 : i32, i32
  }
  func.func @transform_3(%arg0: i32, %arg1: i32, %arg2: i32) -> (i32, i32) {
    %c0_i32 = arith.constant 0 : i32
    return %arg1, %arg0 : i32, i32
  }
}

</mosaic_0001>

<llo_original>
// kernel: merged_qkv_projection.1
$region0: #{merged_qkv_projection.1}
  #allocation0 [shape = 'u32[]', space=smem, size = 0x4, offset = 0x4, fixed_abs, tag = 'smem constant byte address 0x4 - core index']
  #allocation1 [shape = 'u32[72,128]{1,0:T(1,128)}', space=vmem, size = 0x9000, scoped, tag = 'internal scratch']
  #allocation2 [shape = 'f32[16,128]{1,0:T(8,128)}', space=vmem, size = 0x2000, scoped, tag = 'scratch operand']
  %s0 = inlined_call_operand.vmem [shape: bf16[16,128], index: 0, kind: input, shape index: {}]
  %s1 = inlined_call_operand.hbm [shape: bf16[128,128], index: 1, kind: input, shape index: {}]
  %s2 = inlined_call_operand.vmem [shape: f32[1,128], index: 2, kind: input, shape index: {}]
  %s3 = inlined_call_operand.hbm [shape: f32[16,128], index: 3, kind: output, shape index: {}]
  %s4 = sld [smem:[#allocation0]]
  $region38: #{merged_qkv_projection.1} parent=0
    _
  %s6 = ssub.s32 1, %s4
  %s7 = scalar_select 0, %s6, %s4
  $region1: #{merged_qkv_projection.1} parent=0
    #allocation3 [shape = 'u8[32768]{0}', space=vmem, size = 0x8000, scoped, tag = 'input window, operand 1, single buffered']
    #allocation4 [shape = 's32[1]{0}', space=sflag, size = 0x4, scoped, tag = 'scoped memory for merged_qkv_projection.1']
    #allocation5 [shape = 's32[1]{0}', space=sflag, size = 0x4, scoped, tag = 'scoped memory for merged_qkv_projection.1']
    #allocation6 [shape = 'u8[8192]{0}', space=vmem, size = 0x2000, scoped, tag = 'output window, operand 0, single buffered']
    %8 = vsyncpa [#allocation4], 0
    %9 = vsyncpa [#allocation5], 0
    // Predicated region
    $region2: #{merged_qkv_projection.1} parent=1 // pred_check
      _
    $region3: #{merged_qkv_projection.1} parent=1 // pred_check_branch
      %11 = sbr.rel (0) target = $region5
    $region4: #{merged_qkv_projection.1} parent=1 // pred_region
      _
    $region5: #{merged_qkv_projection.1} parent=1 // pred_fallthru
      _
    // Predicated region
    $region6: #{merged_qkv_projection.1} parent=1 // pred_check
      _
    $region7: #{merged_qkv_projection.1} parent=1 // pred_check_branch
      %13 = sbr.rel (0) target = $region9
    $region8: #{merged_qkv_projection.1} parent=1 // pred_region
      %15 = vsyncadd [#allocation4], 0
      %s16 = sshll.u32 %s1, 4
      %s17 = int_to_ptr.hbm [resolvable:$true] %s16
      %s18 = sshll.u32 [#allocation3], 4
      %s19 = int_to_ptr.vmem [resolvable:$true] %s18
      %24 = dma.hbm_to_vmem [thread:$0]  %s17, 1024, %s19, [#allocation4], 64, 64, 4
    $region9: #{merged_qkv_projection.1} parent=1 // pred_fallthru
      _
    // Predicated region
    $region10: #{merged_qkv_projection.1} parent=1 // pred_check
      _
    $region11: #{merged_qkv_projection.1} parent=1 // pred_check_branch
      %26 = sbr.rel (0) target = $region13
    $region12: #{merged_qkv_projection.1} parent=1 // pred_region
      _
    $region13: #{merged_qkv_projection.1} parent=1 // pred_fallthru
      _
    // Predicated region
    $region14: #{merged_qkv_projection.1} parent=1 // pred_check
      _
    $region15: #{merged_qkv_projection.1} parent=1 // pred_check_branch
      %28 = sbr.rel (0) target = $region17
    $region16: #{merged_qkv_projection.1} parent=1 // pred_region
      %30 = dma.done [#allocation4], 1024
    $region17: #{merged_qkv_projection.1} parent=1 // pred_fallthru
      _
    %v31 = vld [vmem:[%s0] sm:$0xf]
    %v32 = vld [vmem:[%s0 + $0x4] sm:$0xf]
    %v33 = vld [vmem:[#allocation3] sm:$0xf]
    %v34 = vld [vmem:[#allocation3 + $0x4] sm:$0xf]
    %v35 = vld [vmem:[#allocation3 + $0x8] sm:$0xf]
    %v36 = vld [vmem:[#allocation3 + $0xc] sm:$0xf]
    %v37 = vld [vmem:[#allocation3 + $0x10] sm:$0xf]
    %v38 = vld [vmem:[#allocation3 + $0x14] sm:$0xf]
    %v39 = vld [vmem:[#allocation3 + $0x18] sm:$0xf]
    %v40 = vld [vmem:[#allocation3 + $0x1c] sm:$0xf]
    %v41 = vld [vmem:[#allocation3 + $0x20] sm:$0xf]
    %v42 = vld [vmem:[#allocation3 + $0x24] sm:$0xf]
    %v43 = vld [vmem:[#allocation3 + $0x28] sm:$0xf]
    %v44 = vld [vmem:[#allocation3 + $0x2c] sm:$0xf]
    %v45 = vld [vmem:[#allocation3 + $0x30] sm:$0xf]
    %v46 = vld [vmem:[#allocation3 + $0x34] sm:$0xf]
    %v47 = vld [vmem:[#allocation3 + $0x38] sm:$0xf]
    %v48 = vld [vmem:[#allocation3 + $0x3c] sm:$0xf]
    %v51 = vunpack.c.l.b16 %v31
    %v52 = vunpack.c.l.b16 %v32
    %v53 = vpack.c.b16 %v52, %v51
    %v71 = vunpack.c.l.b16 %v33
    %v72 = vunpack.c.l.b16 %v34
    %v73 = vunpack.c.l.b16 %v35
    %v74 = vunpack.c.l.b16 %v36
    %v75 = vunpack.c.l.b16 %v37
    %v76 = vunpack.c.l.b16 %v38
    %v77 = vunpack.c.l.b16 %v39
    %v78 = vunpack.c.l.b16 %v40
    %v79 = vunpack.c.l.b16 %v41
    %v80 = vunpack.c.l.b16 %v42
    %v81 = vunpack.c.l.b16 %v43
    %v82 = vunpack.c.l.b16 %v44
    %v83 = vunpack.c.l.b16 %v45
    %v84 = vunpack.c.l.b16 %v46
    %v85 = vunpack.c.l.b16 %v47
    %v86 = vunpack.c.l.b16 %v48
    %v87 = vpack.c.b16 %v72, %v71
    %v88 = vpack.c.b16 %v74, %v73
    %v89 = vpack.c.b16 %v76, %v75
    %v90 = vpack.c.b16 %v78, %v77
    %v91 = vpack.c.b16 %v80, %v79
    %v92 = vpack.c.b16 %v82, %v81
    %v93 = vpack.c.b16 %v84, %v83
    %v94 = vpack.c.b16 %v86, %v85
    %103 = vmatpush.bf16.msra.mxu0 %v94
    %104 = vmatpush.bf16.msra.mxu0 %v93
    %105 = vmatpush.bf16.msra.mxu0 %v92
    %106 = vmatpush.bf16.msra.mxu0 %v91
    %107 = vmatpush.bf16.msra.mxu0 %v90
    %108 = vmatpush.bf16.msra.mxu0 %v89
    %109 = vmatpush.bf16.msra.mxu0 %v88
    %110 = vmatpush.bf16.msra.mxu0 %v87
    %111 = vmatmul.bf16.gmra.mxu0 %v53
    %v112 = vpop.f32.mrf.mxu0
    %v113 = vadd.f32 0.0, %v112
    %v114 = vpop.f32.mrf.mxu0
    %v115 = vadd.f32 0.0, %v114
    %116 = vdwg.mxu0
    %p117 = scmp.eq.s32.totalorder 0, 0
    // Predicated region
    $region18: #{merged_qkv_projection.1} parent=1 // pred_check
      %p118 = pneg %p117
    $region19: #{merged_qkv_projection.1} parent=1 // pred_check_branch
      %120 = sbr.rel (%p118) target = $region21
    $region20: #{merged_qkv_projection.1} parent=1 // pred_region
      %121 = vst [vmem:[#allocation2] sm:$0xff] %v113
      %122 = vst [vmem:[#allocation2 + $0x8] sm:$0xff] %v115
    $region21: #{merged_qkv_projection.1} parent=1 // pred_fallthru
      _
    %p123 = scmp.gt.s32.totalorder 0, 0
    // Predicated region
    $region22: #{merged_qkv_projection.1} parent=1 // pred_check
      %p124 = pneg %p123
    $region23: #{merged_qkv_projection.1} parent=1 // pred_check_branch
      %126 = sbr.rel (%p124) target = $region25
    $region24: #{merged_qkv_projection.1} parent=1 // pred_region
      %v127 = vld [vmem:[#allocation2] sm:$0xff]
      %v128 = vld [vmem:[#allocation2 + $0x8] sm:$0xff]
      %v129 = vadd.f32 %v127, %v113
      %v130 = vadd.f32 %v128, %v115
      %131 = vst [vmem:[#allocation2] sm:$0xff] %v129
      %132 = vst [vmem:[#allocation2 + $0x8] sm:$0xff] %v130
    $region25: #{merged_qkv_projection.1} parent=1 // pred_fallthru
      _
    // Predicated region
    $region26: #{merged_qkv_projection.1} parent=1 // pred_check
      %p133 = pneg %p117
    $region27: #{merged_qkv_projection.1} parent=1 // pred_check_branch
      %135 = sbr.rel (%p133) target = $region29
    $region28: #{merged_qkv_projection.1} parent=1 // pred_region
      %v136 = vld [vmem:[#allocation2] sm:$0xff]
      %v137 = vld [vmem:[#allocation2 + $0x8] sm:$0xff]
      %v138 = vld [vmem:[%s2] sm:$0x1]
      %v140 = vperm.slane %v138, 0
      %v142 = vadd.f32 %v136, %v140
      %v143 = vadd.f32 %v137, %v140
      %144 = vst [vmem:[#allocation6] sm:$0xff] %v142
      %145 = vst [vmem:[#allocation6 + $0x8] sm:$0xff] %v143
    $region29: #{merged_qkv_projection.1} parent=1 // pred_fallthru
      _
    // Predicated region
    $region30: #{merged_qkv_projection.1} parent=1 // pred_check
      _
    $region31: #{merged_qkv_projection.1} parent=1 // pred_check_branch
      %147 = sbr.rel (0) target = $region33
    $region32: #{merged_qkv_projection.1} parent=1 // pred_region
      %149 = vsyncadd [#allocation5], 0
      %s150 = sshll.u32 [#allocation6], 4
      %s151 = int_to_ptr.vmem [resolvable:$true] %s150
      %s152 = sshll.u32 %s3, 4
      %s153 = int_to_ptr.hbm [resolvable:$true] %s152
      %158 = dma.vmem_to_hbm [thread:$0]  %s151, 256, %s153, [#allocation5], 128, 128, 8
    $region33: #{merged_qkv_projection.1} parent=1 // pred_fallthru
      _
    // Predicated region
    $region34: #{merged_qkv_projection.1} parent=1 // pred_check
      _
    $region35: #{merged_qkv_projection.1} parent=1 // pred_check_branch
      %160 = sbr.rel (0) target = $region37
    $region36: #{merged_qkv_projection.1} parent=1 // pred_region
      %162 = dma.done [#allocation5], 256
    $region37: #{merged_qkv_projection.1} parent=1 // pred_fallthru
      _
    %163 = vsyncpa [#allocation4], 1
    %164 = vsyncpa [#allocation5], 1

</llo_original>
